<compile_context>
chip_gen: v7x
topology: tpu7x:2x2x1
jax: 0.10.0
libtpu: 0.0.40
codegen_flags: <defaults>
</compile_context>

<pallas_src>
import jax
import jax.numpy as jnp
from jax.experimental import pallas as pl
from jax.experimental.pallas import tpu as pltpu


def _round_up(x, m):
    return (x + m - 1) // m * m


def _segmentor_kernel(x_ref, w1t_ref, b1_ref, w2t_ref, b2_ref, o_ref, h_acc):
    # x_ref  : (1, tile_c, tile_hw)   channels on sublanes, pixels on lanes (bf16)
    # w1t_ref: (hid_pad, tile_c)      backbone 1x1 conv weight slice (bf16, pre-transposed)
    # b1_ref : (hid_pad, 1)           f32
    # w2t_ref: (cls_pad, hid_pad)     decode-head 1x1 conv weight (bf16, pre-transposed)
    # b2_ref : (cls_pad, 1)           f32
    # o_ref  : (1, cls_pad, tile_hw)  per-pixel logits (lane-dense output)
    # h_acc  : (hid_pad, tile_hw)     f32 accumulator for the hidden features
    k = pl.program_id(2)

    @pl.when(k == 0)
    def _init():
        h_acc[...] = jnp.zeros_like(h_acc)

    # backbone 1x1 conv: partial sum over this C slice (bf16 x bf16 -> f32 acc on MXU)
    h_acc[...] += jnp.dot(w1t_ref[...], x_ref[0],
                          preferred_element_type=jnp.float32)

    @pl.when(k == pl.num_programs(2) - 1)
    def _finalize():
        # bias + ReLU in f32 (VPU), then back to bf16 for the second MXU pass
        h = jnp.maximum(h_acc[...] + b1_ref[...], 0.0).astype(w2t_ref.dtype)
        logits = jnp.dot(w2t_ref[...], h, preferred_element_type=jnp.float32)
        logits = logits + b2_ref[...]
        o_ref[0] = logits.astype(o_ref.dtype)


def segmentor_forward(x_nchw, w1, b1, w2, b2, *,
                      compute_dtype=jnp.bfloat16,
                      vmem_budget_bytes=40 << 20):
    """BaseSegmentor mode='tensor' forward: per-pixel logits (N, num_classes, H, W)."""
    N, C, H, W = x_nchw.shape
    hidden = w1.shape[1]
    num_cls = w2.shape[1]
    hw = H * W

    cdt = jnp.dtype(compute_dtype)
    csz = cdt.itemsize
    granule = 8 * (4 // csz)                 # sublane granule: 8 (f32) / 16 (bf16)
    hid_pad = _round_up(hidden, granule)
    cls_pad = _round_up(num_cls, granule)

    # --- K-loop over C only when the backbone weight is big (v7x VMEM); tile_c | C ---
    if C % 128 == 0 and hid_pad * C * csz > (8 << 20):
        tile_c = max(128, min(C, ((8 << 20) // (hid_pad * csz)) // 128 * 128))
        while C % tile_c:                    # tile_c stays a multiple of 128
            tile_c -= 128
    else:
        tile_c = C
    n_k = C // tile_c                        # exact: tile_c always divides C

    # --- pixel-tile (lane axis) sizing from a VMEM budget ---
    per_col = 2 * tile_c * csz + 2 * cls_pad * csz + hid_pad * 4     # x, out, f32 acc
    w_bytes = (hid_pad * tile_c * csz * (1 if n_k == 1 else 2)
               + cls_pad * hid_pad * csz + (hid_pad + cls_pad) * 4)
    tile_hw = (vmem_budget_bytes - w_bytes) // per_col
    tile_hw = max(128, min(4096, (tile_hw // 128) * 128))
    tile_hw = min(tile_hw, _round_up(hw, 128))
    if N == 1:  # v7x megacore: keep >= 2 pixel steps so both TensorCores get work
        while pl.cdiv(hw, tile_hw) < 2 and tile_hw > 128:
            tile_hw = max(128, ((tile_hw // 2) // 128) * 128)
    n_hw = pl.cdiv(hw, tile_hw)

    # NCHW -> (N, C, H*W): free contiguous reshape; NO padding round-trip (the partial
    # boundary pixel block is masked by Pallas; its lanes never reach HBM).
    x3 = x_nchw.reshape(N, C, hw).astype(compute_dtype)

    # Tiny weights: transpose once (contraction on the sublane axis), cast to bf16,
    # zero-pad hidden / num_classes up to the sublane granule (exact, zeros are inert).
    w1t = jnp.pad(jnp.transpose(w1).astype(compute_dtype),
                  ((0, hid_pad - hidden), (0, 0)))                       # (hid_pad, C)
    w2t = jnp.pad(jnp.transpose(w2).astype(compute_dtype),
                  ((0, cls_pad - num_cls), (0, hid_pad - hidden)))       # (cls_pad, hid_pad)
    b1_2d = jnp.pad(b1.astype(jnp.float32), (0, hid_pad - hidden)).reshape(hid_pad, 1)
    b2_2d = jnp.pad(b2.astype(jnp.float32), (0, cls_pad - num_cls)).reshape(cls_pad, 1)

    grid = (N, n_hw, n_k)
    resident = dict(pipeline_mode=pl.Buffered(1))   # constant index_map -> single buffer
    w1_kwargs = resident if n_k == 1 else {}        # keep double-buffering for the K loop

    in_specs = [
        pl.BlockSpec((1, tile_c, tile_hw), lambda n, j, k: (n, k, j)),
        pl.BlockSpec((hid_pad, tile_c), lambda n, j, k: (0, k), **w1_kwargs),
        pl.BlockSpec((hid_pad, 1), lambda n, j, k: (0, 0), **resident),
        pl.BlockSpec((cls_pad, hid_pad), lambda n, j, k: (0, 0), **resident),
        pl.BlockSpec((cls_pad, 1), lambda n, j, k: (0, 0), **resident),
    ]
    out_spec = pl.BlockSpec((1, cls_pad, tile_hw), lambda n, j, k: (n, 0, j))

    nbytes = lambda a: a.size * a.dtype.itemsize
    cost = pl.CostEstimate(
        flops=2 * N * hw * (C * hid_pad + hid_pad * cls_pad),
        transcendentals=0,
        bytes_accessed=(nbytes(x3) + nbytes(w1t) + nbytes(w2t)
                        + nbytes(b1_2d) + nbytes(b2_2d) + N * cls_pad * hw * csz),
    )

    vmem_est = w_bytes + per_col * tile_hw + (2 << 20)
    vmem_limit = int(min(56 << 20, max(vmem_est, 32 << 20)))

    out3 = pl.pallas_call(
        _segmentor_kernel,
        out_shape=jax.ShapeDtypeStruct((N, cls_pad, hw), compute_dtype),
        grid_spec=pltpu.PrefetchScalarGridSpec(
            num_scalar_prefetch=0,
            grid=grid,
            in_specs=in_specs,
            out_specs=out_spec,
            scratch_shapes=[pltpu.VMEM((hid_pad, tile_hw), jnp.float32)],
        ),
        compiler_params=pltpu.CompilerParams(
            dimension_semantics=("parallel", "parallel", "arbitrary"),
            vmem_limit_bytes=vmem_limit),
        cost_estimate=cost,
    )(x3, w1t, b1_2d, w2t, b2_2d)

    logits = out3 if cls_pad == num_cls else out3[:, :num_cls, :]
    return logits.reshape(N, num_cls, H, W)


# TODO(synk): BaseSegmentor modes 'loss' / 'predict' depend on SegDataSample
# metadata (gt_sem_seg, resize/post-processing) with no tensor semantics in the
# abstract class; only mode='tensor' is implemented here.


if __name__ == "__main__":
    key = jax.random.PRNGKey(0)
    k_x, k_w1, k_b1, k_w2, k_b2 = jax.random.split(key, 5)

    N, C, H, W = 2, 4, 16, 16
    HIDDEN, NUM_CLS = 32, 8

    x = jax.random.normal(k_x, (N, C, H, W), dtype=jnp.float32)
    w1 = jax.random.normal(k_w1, (C, HIDDEN), dtype=jnp.float32) * 0.1
    b1 = jax.random.normal(k_b1, (HIDDEN,), dtype=jnp.float32) * 0.01
    w2 = jax.random.normal(k_w2, (HIDDEN, NUM_CLS), dtype=jnp.float32) * 0.1
    b2 = jax.random.normal(k_b2, (NUM_CLS,), dtype=jnp.float32) * 0.01

    out = segmentor_forward(x, w1, b1, w2, b2)
    out = jax.block_until_ready(out)

    # reference in plain JAX, mimicking the kernel's bf16-operand / f32-accum path
    f32 = jnp.float32
    xb = x.astype(jnp.bfloat16).astype(f32)
    w1b = w1.astype(jnp.bfloat16).astype(f32)
    w2b = w2.astype(jnp.bfloat16).astype(f32)
    ref_h = jnp.maximum(jnp.einsum("nchw,cd->ndhw", xb, w1b)
                        + b1[None, :, None, None], 0.0)
    ref_h = ref_h.astype(jnp.bfloat16).astype(f32)
    ref = jnp.einsum("ndhw,dk->nkhw", ref_h, w2b) + b2[None, :, None, None]
    ref = ref.astype(jnp.bfloat16).astype(f32)

    assert out.shape == (N, NUM_CLS, H, W)
    assert out.dtype == jnp.bfloat16
    assert jnp.allclose(out.astype(f32), ref, atol=2e-2, rtol=2e-2)

    print("KERNEL_OK")
</pallas_src>

<mosaic_0001>
module attributes {stable_mosaic.version = 11 : i64} {
  func.func @_segmentor_kernel(%arg0: i32, %arg1: i32, %arg2: i32, %arg3: memref<1x4x256xbf16, #tpu.memory_space<vmem>>, %arg4: memref<32x4xbf16, #tpu.memory_space<vmem>>, %arg5: memref<32x1xf32, #tpu.memory_space<vmem>>, %arg6: memref<16x32xbf16, #tpu.memory_space<vmem>>, %arg7: memref<16x1xf32, #tpu.memory_space<vmem>>, %arg8: memref<1x16x256xbf16, #tpu.memory_space<vmem>>, %arg9: memref<32x256xf32, #tpu.memory_space<vmem>>) attributes {dimension_semantics = [#tpu.dimension_semantics<parallel>, #tpu.dimension_semantics<parallel>, #tpu.dimension_semantics<arbitrary>], iteration_bounds = array<i64: 2, 1, 1>, scalar_prefetch = 0 : i64, scratch_operands = 1 : i64, tpu.core_type = #tpu.core_type<tc>, window_params = [{transform_indices = @transform_0, window_bounds = array<i64: 1, 4, 256>}, {pipeline_mode = #tpu.pipeline_mode<synchronous>, transform_indices = @transform_1, window_bounds = array<i64: 32, 4>}, {pipeline_mode = #tpu.pipeline_mode<synchronous>, transform_indices = @transform_2, window_bounds = array<i64: 32, 1>}, {pipeline_mode = #tpu.pipeline_mode<synchronous>, transform_indices = @transform_3, window_bounds = array<i64: 16, 32>}, {pipeline_mode = #tpu.pipeline_mode<synchronous>, transform_indices = @transform_4, window_bounds = array<i64: 16, 1>}, {transform_indices = @transform_5, window_bounds = array<i64: 1, 16, 256>}]} {
    %c0_i32 = arith.constant 0 : i32
    %0 = arith.cmpi eq, %arg2, %c0_i32 : i32
    %1 = arith.extui %0 : i1 to i32
    %c0_i32_0 = arith.constant 0 : i32
    %2 = arith.cmpi ne, %1, %c0_i32_0 : i32
    scf.if %2 {
      %cst_11 = arith.constant 0.000000e+00 : f32
      %13 = vector.broadcast %cst_11 : f32 to vector<32x256xf32>
      %c0_12 = arith.constant 0 : index
      %c0_13 = arith.constant 0 : index
      %14 = vector.load %arg9[%c0_12, %c0_13] : memref<32x256xf32, #tpu.memory_space<vmem>>, vector<32x256xf32>
      tpu.vector_store %arg9[%c0_12, %c0_13], %13 {strides = array<i32>} : memref<32x256xf32, #tpu.memory_space<vmem>>, vector<32x256xf32>,
    } else {
    }
    %c0 = arith.constant 0 : index
    %c0_1 = arith.constant 0 : index
    %3 = vector.load %arg9[%c0, %c0_1] : memref<32x256xf32, #tpu.memory_space<vmem>>, vector<32x256xf32>
    %c0_2 = arith.constant 0 : index
    %c0_3 = arith.constant 0 : index
    %4 = vector.load %arg4[%c0_2, %c0_3] : memref<32x4xbf16, #tpu.memory_space<vmem>>, vector<32x4xbf16>
    %c0_4 = arith.constant 0 : index
    %c0_5 = arith.constant 0 : index
    %c0_6 = arith.constant 0 : index
    %5 = vector.load %arg3[%c0_4, %c0_5, %c0_6] : memref<1x4x256xbf16, #tpu.memory_space<vmem>>, vector<1x4x256xbf16>
    %6 = vector.shape_cast %5 : vector<1x4x256xbf16> to vector<4x256xbf16>
    %cst = arith.constant dense<0.000000e+00> : vector<32x256xf32>
    %7 = tpu.matmul %4, %6, %cst {dimension_numbers = #tpu.dot_dimension_numbers<[1], [0], [0], [1], [0, 0, 1, 1], [], []>} : vector<32x4xbf16>, vector<4x256xbf16>, vector<32x256xf32> -> vector<32x256xf32>
    %8 = arith.addf %3, %7 : vector<32x256xf32>
    %c0_7 = arith.constant 0 : index
    %c0_8 = arith.constant 0 : index
    %9 = vector.load %arg9[%c0_7, %c0_8] : memref<32x256xf32, #tpu.memory_space<vmem>>, vector<32x256xf32>
    tpu.vector_store %arg9[%c0_7, %c0_8], %8 {strides = array<i32>} : memref<32x256xf32, #tpu.memory_space<vmem>>, vector<32x256xf32>,
    %c0_i32_9 = arith.constant 0 : i32
    %10 = arith.cmpi eq, %arg2, %c0_i32_9 : i32
    %11 = arith.extui %10 : i1 to i32
    %c0_i32_10 = arith.constant 0 : i32
    %12 = arith.cmpi ne, %11, %c0_i32_10 : i32
    scf.if %12 {
      %c0_11 = arith.constant 0 : index
      %c0_12 = arith.constant 0 : index
      %13 = vector.load %arg9[%c0_11, %c0_12] : memref<32x256xf32, #tpu.memory_space<vmem>>, vector<32x256xf32>
      %c0_13 = arith.constant 0 : index
      %c0_14 = arith.constant 0 : index
      %14 = vector.load %arg5[%c0_13, %c0_14] : memref<32x1xf32, #tpu.memory_space<vmem>>, vector<32x1xf32>
      %15 = vector.broadcast %14 : vector<32x1xf32> to vector<32x256xf32>
      %16 = arith.addf %13, %15 : vector<32x256xf32>
      %cst_15 = arith.constant 0.000000e+00 : f32
      %17 = vector.broadcast %cst_15 : f32 to vector<32x256xf32>
      %18 = arith.maximumf %16, %17 : vector<32x256xf32>
      %19 = arith.truncf %18 : vector<32x256xf32> to vector<32x256xbf16>
      %c0_16 = arith.constant 0 : index
      %c0_17 = arith.constant 0 : index
      %20 = vector.load %arg6[%c0_16, %c0_17] : memref<16x32xbf16, #tpu.memory_space<vmem>>, vector<16x32xbf16>
      %cst_18 = arith.constant dense<0.000000e+00> : vector<16x256xf32>
      %21 = tpu.matmul %20, %19, %cst_18 {dimension_numbers = #tpu.dot_dimension_numbers<[1], [0], [0], [1], [0, 0, 1, 1], [], []>} : vector<16x32xbf16>, vector<32x256xbf16>, vector<16x256xf32> -> vector<16x256xf32>
      %c0_19 = arith.constant 0 : index
      %c0_20 = arith.constant 0 : index
      %22 = vector.load %arg7[%c0_19, %c0_20] : memref<16x1xf32, #tpu.memory_space<vmem>>, vector<16x1xf32>
      %23 = vector.broadcast %22 : vector<16x1xf32> to vector<16x256xf32>
      %24 = arith.addf %21, %23 : vector<16x256xf32>
      %25 = arith.truncf %24 : vector<16x256xf32> to vector<16x256xbf16>
      %c0_21 = arith.constant 0 : index
      %c0_22 = arith.constant 0 : index
      %c0_23 = arith.constant 0 : index
      %26 = vector.load %arg8[%c0_21, %c0_22, %c0_23] : memref<1x16x256xbf16, #tpu.memory_space<vmem>>, vector<1x16x256xbf16>
      %27 = vector.shape_cast %26 : vector<1x16x256xbf16> to vector<16x256xbf16>
      %28 = vector.shape_cast %25 : vector<16x256xbf16> to vector<1x16x256xbf16>
      tpu.vector_store %arg8[%c0_21, %c0_22, %c0_23], %28 {strides = array<i32>} : memref<1x16x256xbf16, #tpu.memory_space<vmem>>, vector<1x16x256xbf16>,
    } else {
    }
    return
  }
  func.func @transform_0(%arg0: i32, %arg1: i32, %arg2: i32) -> (i32, i32, i32) {
    %c0_i32 = arith.constant 0 : i32
    return %arg0, %arg2, %arg1 : i32, i32, i32
  }
  func.func @transform_1(%arg0: i32, %arg1: i32, %arg2: i32) -> (i32, i32) {
    %c0_i32 = arith.constant 0 : i32
    %c0_i32_0 = arith.constant 0 : i32
    return %c0_i32, %arg2 : i32, i32
  }
  func.func @transform_2(%arg0: i32, %arg1: i32, %arg2: i32) -> (i32, i32) {
    %c0_i32 = arith.constant 0 : i32
    %c0_i32_0 = arith.constant 0 : i32
    %c0_i32_1 = arith.constant 0 : i32
    return %c0_i32, %c0_i32_0 : i32, i32
  }
  func.func @transform_3(%arg0: i32, %arg1: i32, %arg2: i32) -> (i32, i32) {
    %c0_i32 = arith.constant 0 : i32
    %c0_i32_0 = arith.constant 0 : i32
    %c0_i32_1 = arith.constant 0 : i32
    return %c0_i32, %c0_i32_0 : i32, i32
  }
  func.func @transform_4(%arg0: i32, %arg1: i32, %arg2: i32) -> (i32, i32) {
    %c0_i32 = arith.constant 0 : i32
    %c0_i32_0 = arith.constant 0 : i32
    %c0_i32_1 = arith.constant 0 : i32
    return %c0_i32, %c0_i32_0 : i32, i32
  }
  func.func @transform_5(%arg0: i32, %arg1: i32, %arg2: i32) -> (i32, i32, i32) {
    %c0_i32 = arith.constant 0 : i32
    %c0_i32_0 = arith.constant 0 : i32
    return %arg0, %c0_i32, %arg1 : i32, i32, i32
  }
}

</mosaic_0001>

<llo_original>
// kernel: tpu_custom_call.1
$region0: #{tpu_custom_call.1}
  #allocation0 [shape = 'u32[]', space=smem, size = 0x4, offset = 0x4, fixed_abs, tag = 'smem constant byte address 0x4 - core index']
  #allocation1 [shape = 'u32[144,128]{1,0:T(1,128)}', space=vmem, size = 0x12000, scoped, tag = 'internal scratch']
  #allocation2 [shape = 'f32[32,256]{1,0:T(8,128)}', space=vmem, size = 0x8000, scoped, tag = 'scratch operand']
  %s0 = inlined_call_operand.vmem [shape: bf16[2,4,256], index: 0, kind: input, shape index: {}]
  %s1 = inlined_call_operand.vmem [shape: bf16[32,4], index: 1, kind: input, shape index: {}]
  %s2 = inlined_call_operand.vmem [shape: f32[32,1], index: 2, kind: input, shape index: {}]
  %s3 = inlined_call_operand.vmem [shape: bf16[16,32], index: 3, kind: input, shape index: {}]
  %s4 = inlined_call_operand.vmem [shape: f32[16,1], index: 4, kind: input, shape index: {}]
  %s5 = inlined_call_operand.hbm [shape: bf16[2,16,256], index: 5, kind: output, shape index: {}]
  %s6 = sld [smem:[#allocation0]]
  $region61: #{tpu_custom_call.1} parent=0
    _
  %s8 = ssub.s32 1, %s6
  %s9 = scalar_select 0, %s8, %s6
  $region1: #{tpu_custom_call.1} parent=0
    #allocation3 [shape = 'u8[16384]{0}', space=vmem, size = 0x4000, scoped, tag = 'output window, operand 0']
    #allocation4 [shape = 's32[2]{0}', space=sflag, size = 0x8, scoped, tag = 'scoped memory for tpu_custom_call.1']
    %10 = vsyncpa [#allocation4], 0
    %s11 = scalar_lea.sflag [#allocation4], 1
    %12 = vsyncpa %s11, 0
    loop: start=0, step=1, limit=4
    $region2: #{tpu_custom_call.1} parent=1 // loop_pre_header
      _
    $region3: #{tpu_custom_call.1} parent=1 // loop_header
      %s14 = sphi 0, %s18
      %p15 = scmp.ge.s32.totalorder %s14, 4
      %s21 = sphi 0, %s40
      %s22 = sphi 0, %s36
      %s23 = sphi 0, %s32
      %s24 = sphi 0, %s21
      %s25 = sphi 0, %s22
      %s26 = sphi 0, %s23
      %s27 = sphi 0, %s24
      %s28 = sphi 0, %s25
      %s29 = sphi 0, %s26
      %s47 = sphi 0, %s49
      %s50 = sphi 0, %s47
      %s51 = sphi 0, %s50
      %s67 = sphi 0, %s51
      %s73 = sphi 0, %s75
      %s76 = sphi 0, %s73
      %s77 = sphi 0, %s76
      %s93 = sphi 0, %s77
      %s97 = sphi 0, %s97
      %s99 = sphi 0, %s97
      %s100 = sphi 0, %s99
      %s114 = sphi 0, %s100
      %s118 = sphi 0, %s118
      %s120 = sphi 0, %s118
      %s121 = sphi 0, %s120
      %s135 = sphi 0, %s121
      %s139 = sphi 0, %s139
      %s141 = sphi 0, %s139
      %s142 = sphi 0, %s141
      %s156 = sphi 0, %s142
      %s164 = sphi 0, %s166
      %s167 = sphi 0, %s164
      %s168 = sphi 0, %s167
      %s184 = sphi 0, %s168
    $region4: #{tpu_custom_call.1} parent=1 // loop_header_branch
      %17 = sbr.rel (%p15) target = $region8
    $region5: #{tpu_custom_call.1} parent=1 // loop_body
      %s19 = ssub.s32 %s14, 1
      %s20 = ssub.s32 %s14, 2
      %s30 = sadd.s32 1, %s23
      %p31 = scmp.ge.s32.totalorder %s30, 1
      %s32 = scalar_select %p31, 0, %s30
      %s33 = sadd.s32 1, %s22
      %s34 = scalar_select %p31, %s33, %s22
      %p35 = scmp.ge.s32.totalorder %s34, 1
      %s36 = scalar_select %p35, 0, %s34
      %s37 = sadd.s32 1, %s21
      %s38 = scalar_select %p35, %s37, %s21
      %p39 = scmp.ge.s32.totalorder %s38, 2
      %s40 = scalar_select %p39, 0, %s38
      %s41 = ssub.s32 %s21, %s40
      %s42 = ssub.s32 %s23, %s32
      %s43 = sor.u32 %s41, %s42
      %s44 = ssub.s32 %s22, %s36
      %s45 = sor.u32 %s43, %s44
      %p46 = scmp.eq.s32.totalorder %s45, 0
      %s48 = sadd.s32 %s47, 1
      %s49 = scalar_select %p46, %s47, %s48
      %p52 = pneg %p46
      %p53 = scmp.eq.s32.totalorder %s14, 1
      %p54 = por %p52, %p53
      %p55 = scmp.ne.s32.totalorder %s47, %s50
      %p56 = scmp.eq.s32.totalorder %s14, 0
      %p57 = por %p55, %p56
      %p58 = scmp.ne.s32.totalorder %s47, %s50
      %p59 = scmp.eq.s32.totalorder %s19, 1
      %p60 = por %p58, %p59
      %p61 = scmp.ne.s32.totalorder %s50, %s51
      %p62 = scmp.eq.s32.totalorder %s19, 0
      %p63 = por %p61, %p62
      %p64 = scmp.ne.s32.totalorder %s50, %s51
      %p65 = scmp.eq.s32.totalorder %s20, 1
      %p66 = por %p64, %p65
      %p68 = scmp.ne.s32.totalorder %s51, %s67
      %p69 = scmp.eq.s32.totalorder %s20, 0
      %p70 = por %p68, %p69
      %s71 = ssub.s32 %s23, %s32
      %p72 = scmp.eq.s32.totalorder %s71, 0
      %s74 = sadd.s32 %s73, 1
      %s75 = scalar_select %p72, %s73, %s74
      %p78 = pneg %p72
      %p79 = scmp.eq.s32.totalorder %s14, 1
      %p80 = por %p78, %p79
      %p81 = scmp.ne.s32.totalorder %s73, %s76
      %p82 = scmp.eq.s32.totalorder %s14, 0
      %p83 = por %p81, %p82
      %p84 = scmp.ne.s32.totalorder %s73, %s76
      %p85 = scmp.eq.s32.totalorder %s19, 1
      %p86 = por %p84, %p85
      %p87 = scmp.ne.s32.totalorder %s76, %s77
      %p88 = scmp.eq.s32.totalorder %s19, 0
      %p89 = por %p87, %p88
      %p90 = scmp.ne.s32.totalorder %s76, %s77
      %p91 = scmp.eq.s32.totalorder %s20, 1
      %p92 = por %p90, %p91
      %p94 = scmp.ne.s32.totalorder %s77, %s93
      %p95 = scmp.eq.s32.totalorder %s20, 0
      %p96 = por %p94, %p95
      %s98 = sadd.s32 %s97, 1
      %p101 = scmp.eq.s32.totalorder %s14, 1
      %p102 = scmp.ne.s32.totalorder %s97, %s99
      %p103 = scmp.eq.s32.totalorder %s14, 0
      %p104 = por %p102, %p103
      %p105 = scmp.ne.s32.totalorder %s97, %s99
      %p106 = scmp.eq.s32.totalorder %s19, 1
      %p107 = por %p105, %p106
      %p108 = scmp.ne.s32.totalorder %s99, %s100
      %p109 = scmp.eq.s32.totalorder %s19, 0
      %p110 = por %p108, %p109
      %p111 = scmp.ne.s32.totalorder %s99, %s100
      %p112 = scmp.eq.s32.totalorder %s20, 1
      %p113 = por %p111, %p112
      %p115 = scmp.ne.s32.totalorder %s100, %s114
      %p116 = scmp.eq.s32.totalorder %s20, 0
      %p117 = por %p115, %p116
      %s119 = sadd.s32 %s118, 1
      %p122 = scmp.eq.s32.totalorder %s14, 1
      %p123 = scmp.ne.s32.totalorder %s118, %s120
      %p124 = scmp.eq.s32.totalorder %s14, 0
      %p125 = por %p123, %p124
      %p126 = scmp.ne.s32.totalorder %s118, %s120
      %p127 = scmp.eq.s32.totalorder %s19, 1
      %p128 = por %p126, %p127
      %p129 = scmp.ne.s32.totalorder %s120, %s121
      %p130 = scmp.eq.s32.totalorder %s19, 0
      %p131 = por %p129, %p130
      %p132 = scmp.ne.s32.totalorder %s120, %s121
      %p133 = scmp.eq.s32.totalorder %s20, 1
      %p134 = por %p132, %p133
      %p136 = scmp.ne.s32.totalorder %s121, %s135
      %p137 = scmp.eq.s32.totalorder %s20, 0
      %p138 = por %p136, %p137
      %s140 = sadd.s32 %s139, 1
      %p143 = scmp.eq.s32.totalorder %s14, 1
      %p144 = scmp.ne.s32.totalorder %s139, %s141
      %p145 = scmp.eq.s32.totalorder %s14, 0
      %p146 = por %p144, %p145
      %p147 = scmp.ne.s32.totalorder %s139, %s141
      %p148 = scmp.eq.s32.totalorder %s19, 1
      %p149 = por %p147, %p148
      %p150 = scmp.ne.s32.totalorder %s141, %s142
      %p151 = scmp.eq.s32.totalorder %s19, 0
      %p152 = por %p150, %p151
      %p153 = scmp.ne.s32.totalorder %s141, %s142
      %p154 = scmp.eq.s32.totalorder %s20, 1
      %p155 = por %p153, %p154
      %p157 = scmp.ne.s32.totalorder %s142, %s156
      %p158 = scmp.eq.s32.totalorder %s20, 0
      %p159 = por %p157, %p158
      %s160 = ssub.s32 %s21, %s40
      %s161 = ssub.s32 %s22, %s36
      %s162 = sor.u32 %s160, %s161
      %p163 = scmp.eq.s32.totalorder %s162, 0
      %s165 = sadd.s32 %s164, 1
      %s166 = scalar_select %p163, %s164, %s165
      %p169 = pneg %p163
      %p170 = scmp.eq.s32.totalorder %s14, 1
      %p171 = por %p169, %p170
      %p172 = scmp.ne.s32.totalorder %s164, %s167
      %p173 = scmp.eq.s32.totalorder %s14, 0
      %p174 = por %p172, %p173
      %p175 = scmp.ne.s32.totalorder %s164, %s167
      %p176 = scmp.eq.s32.totalorder %s19, 1
      %p177 = por %p175, %p176
      %p178 = scmp.ne.s32.totalorder %s167, %s168
      %p179 = scmp.eq.s32.totalorder %s19, 0
      %p180 = por %p178, %p179
      %p181 = scmp.ne.s32.totalorder %s167, %s168
      %p182 = scmp.eq.s32.totalorder %s20, 1
      %p183 = por %p181, %p182
      %p185 = scmp.ne.s32.totalorder %s168, %s184
      %p186 = scmp.eq.s32.totalorder %s20, 0
      %p187 = por %p185, %p186
      %p188 = scmp.le.s32.totalorder 1, %s14
      %p189 = scmp.lt.s32.totalorder %s14, 3
      %p190 = pnand %p188, %p189
      %p191 = pneg %p190
      // Predicated region
      $region9: #{tpu_custom_call.1} parent=5 // pred_check
        _
      $region10: #{tpu_custom_call.1} parent=5 // pred_check_branch
        %193 = sbr.rel (%p190) target = $region12
      $region11: #{tpu_custom_call.1} parent=5 // pred_region
        %s194 = ssub.s32 %s14, 1
        // Predicated region
        $region13: #{tpu_custom_call.1} parent=11 // pred_check
          %p195 = pneg %p89
        $region14: #{tpu_custom_call.1} parent=11 // pred_check_branch
          %197 = sbr.rel (%p195) target = $region16
        $region15: #{tpu_custom_call.1} parent=11 // pred_region
          %p198 = scmp.lt.s32.totalorder %s26, 0
          %s199 = scalar_select %p198, %s26, 0
          %s200 = smul.addr %s199, 4
          %s201 = scalar_lea.vmem %s1, %s200
        $region16: #{tpu_custom_call.1} parent=11 // pred_fallthru
          _
        // Predicated region
        $region17: #{tpu_custom_call.1} parent=11 // pred_check
          %p202 = pneg %p110
        $region18: #{tpu_custom_call.1} parent=11 // pred_check_branch
          %204 = sbr.rel (%p202) target = $region20
        $region19: #{tpu_custom_call.1} parent=11 // pred_region
          _
        $region20: #{tpu_custom_call.1} parent=11 // pred_fallthru
          _
        // Predicated region
        $region21: #{tpu_custom_call.1} parent=11 // pred_check
          %p205 = pneg %p131
        $region22: #{tpu_custom_call.1} parent=11 // pred_check_branch
          %207 = sbr.rel (%p205) target = $region24
        $region23: #{tpu_custom_call.1} parent=11 // pred_region
          _
        $region24: #{tpu_custom_call.1} parent=11 // pred_fallthru
          _
        // Predicated region
        $region25: #{tpu_custom_call.1} parent=11 // pred_check
          %p208 = pneg %p152
        $region26: #{tpu_custom_call.1} parent=11 // pred_check_branch
          %210 = sbr.rel (%p208) target = $region28
        $region27: #{tpu_custom_call.1} parent=11 // pred_region
          _
        $region28: #{tpu_custom_call.1} parent=11 // pred_fallthru
          _
      $region12: #{tpu_custom_call.1} parent=5 // pred_fallthru
        _
      %p211 = scmp.lt.s32.totalorder %s14, 2
      // Predicated region
      $region29: #{tpu_custom_call.1} parent=5 // pred_check
        %p212 = pneg %p211
      $region30: #{tpu_custom_call.1} parent=5 // pred_check_branch
        %214 = sbr.rel (%p212) target = $region32
      $region31: #{tpu_custom_call.1} parent=5 // pred_region
        // Predicated region
        $region33: #{tpu_custom_call.1} parent=31 // pred_check
          %p215 = pneg %p57
        $region34: #{tpu_custom_call.1} parent=31 // pred_check_branch
          %217 = sbr.rel (%p215) target = $region36
        $region35: #{tpu_custom_call.1} parent=31 // pred_region
          %s218 = smul.u32 2, %s22
          %p219 = scmp.lt.s32.totalorder %s21, 1
          %s220 = scalar_select %p219, %s21, 1
          %p221 = scmp.lt.s32.totalorder %s23, 0
          %s222 = scalar_select %p221, %s23, 0
          %p223 = scmp.lt.s32.totalorder %s218, 1
          %s224 = scalar_select %p223, %s218, 1
          %s225 = smul.addr %s222, 2
          %s226 = sadd.s32 %s224, %s225
          %s227 = smul.addr %s220, 2
          %s228 = sadd.s32 %s226, %s227
          %s229 = smul.addr %s228, 2
          %s230 = scalar_lea.vmem %s0, %s229
          %s231 = smul.u32 2, %s22
        $region36: #{tpu_custom_call.1} parent=31 // pred_fallthru
          _
      $region32: #{tpu_custom_call.1} parent=5 // pred_fallthru
        _
      %p232 = scmp.le.s32.totalorder 1, %s14
      %p233 = scmp.lt.s32.totalorder %s14, 3
      %p234 = pnand %p232, %p233
      %p235 = pneg %p234
      // Predicated region
      $region37: #{tpu_custom_call.1} parent=5 // pred_check
        _
      $region38: #{tpu_custom_call.1} parent=5 // pred_check_branch
        %237 = sbr.rel (%p234) target = $region40
      $region39: #{tpu_custom_call.1} parent=5 // pred_region
        %s238 = ssub.s32 %s14, 1
        %s239 = smul.u32 2, %s25
        %p240 = scmp.lt.s32.totalorder %s24, 1
        %s241 = scalar_select %p240, %s24, 1
        %p242 = scmp.lt.s32.totalorder %s26, 0
        %s243 = scalar_select %p242, %s26, 0
        %p244 = scmp.lt.s32.totalorder %s239, 1
        %s245 = scalar_select %p244, %s239, 1
        %s246 = smul.addr %s243, 2
        %s247 = sadd.s32 %s245, %s246
        %s248 = smul.addr %s241, 2
        %s249 = sadd.s32 %s247, %s248
        %s250 = smul.addr %s249, 2
        %s251 = scalar_lea.vmem %s0, %s250
        %p252 = pneg %p63
        %p253 = pneg %p60
        %p254 = scmp.lt.s32.totalorder %s26, 0
        %s255 = scalar_select %p254, %s26, 0
        %s256 = smul.addr %s255, 4
        %s257 = scalar_lea.vmem %s1, %s256
        %p258 = pneg %p89
        %p259 = pneg %p86
        %p260 = pneg %p110
        %p261 = pneg %p107
        %p262 = pneg %p131
        %p263 = pneg %p128
        %p264 = pneg %p152
        %p265 = pneg %p149
        %p266 = pneg %p180
        %p267 = pneg %p177
        %s268 = sand.u32 %s167, 1
        %s269 = scalar_lea.sflag [#allocation4], %s268
        %s270 = sand.u32 %s167, 1
        %s271 = smul.addr %s270, 16
        %s272 = scalar_lea.vmem [#allocation3], %s271
        %s273 = smul.u32 2, %s25
        %p274 = scmp.lt.s32.totalorder %s24, 1
        %s275 = scalar_select %p274, %s24, 1
        %p276 = scmp.lt.s32.totalorder %s26, 0
        %s277 = scalar_select %p276, %s26, 0
        %p278 = scmp.lt.s32.totalorder %s273, 1
        %s279 = scalar_select %p278, %s273, 1
        %s280 = smul.addr %s277, 2
        %s281 = sadd.s32 %s279, %s280
        %s282 = smul.addr %s275, 2
        %s283 = sadd.s32 %s281, %s282
        %s284 = smul.addr %s283, 2
        %s285 = scalar_lea.vmem %s0, %s284
        %s286 = smul.u32 2, %s25
        %p287 = scmp.lt.s32.totalorder %s26, 0
        %s288 = scalar_select %p287, %s26, 0
        %s289 = smul.addr %s288, 4
        %s290 = scalar_lea.vmem %s1, %s289
        %s291 = smul.u32 2, %s25
        %p293 = scmp.eq.s32.totalorder %s26, 0
        // Predicated region
        $region41: #{tpu_custom_call.1} parent=39 // pred_check
          %p294 = pneg %p293
        $region42: #{tpu_custom_call.1} parent=39 // pred_check_branch
          %296 = sbr.rel (%p294) target = $region44
        $region43: #{tpu_custom_call.1} parent=39 // pred_region
          %297 = vst [vmem:[#allocation2] sm:$0xff] 0.0
          %298 = vst [vmem:[#allocation2 + $0x8] sm:$0xff] 0.0
          %299 = vst [vmem:[#allocation2 + $0x10] sm:$0xff] 0.0
          %300 = vst [vmem:[#allocation2 + $0x18] sm:$0xff] 0.0
          %301 = vst [vmem:[#allocation2 + $0x20] sm:$0xff] 0.0
          %302 = vst [vmem:[#allocation2 + $0x28] sm:$0xff] 0.0
          %303 = vst [vmem:[#allocation2 + $0x30] sm:$0xff] 0.0
          %304 = vst [vmem:[#allocation2 + $0x38] sm:$0xff] 0.0
        $region44: #{tpu_custom_call.1} parent=39 // pred_fallthru
          _
        %v305 = vld [vmem:[#allocation2] sm:$0xff]
        %v306 = vld [vmem:[#allocation2 + $0x8] sm:$0xff]
        %v307 = vld [vmem:[#allocation2 + $0x10] sm:$0xff]
        %v308 = vld [vmem:[#allocation2 + $0x18] sm:$0xff]
        %v309 = vld [vmem:[#allocation2 + $0x20] sm:$0xff]
        %v310 = vld [vmem:[#allocation2 + $0x28] sm:$0xff]
        %v311 = vld [vmem:[#allocation2 + $0x30] sm:$0xff]
        %v312 = vld [vmem:[#allocation2 + $0x38] sm:$0xff]
        %v313 = vld [vmem:[%s290] sm:$0xf]
        %v314 = vld [vmem:[%s290 + $0x4] sm:$0xf]
        %v315 = vld [vmem:[%s290 + $0x8] sm:$0xf]
        %v316 = vld [vmem:[%s290 + $0xc] sm:$0xf]
        %v317 = vld [vmem:[%s285] sm:$0xf]
        %v322 = vunpack.c.l.b16 %v313
        %v323 = vunpack.c.l.b16 %v314
        %v324 = vunpack.c.l.b16 %v315
        %v325 = vunpack.c.l.b16 %v316
        %v326 = vpack.c.b16 %v323, %v322
        %v327 = vpack.c.b16 %v325, %v324
        %v330 = vunpack.c.l.s4 1983009808
        %v331 = vunpack.c.0.s8 %v330
        %v332 = vlaneseq
        %v333 = vshrl.u32 %v332, 7
        %v334 = vsub.s32 %v331, %v333
        %v335 = vrot.slane %v317, %v334
        %v336 = vcombine.high %v335, %v335
        %vm337 = vcmask 31744
        %v339 = vsel %vm337, %v326, 0
        %v342 = vsel %vm337, %v327, 0
        %vm344 = vcmask 1041408
        %v346 = vsel %vm344, %v335, 0
        %v349 = vsel %vm344, %v336, 0
        %351 = vmatprep.subr.bf16.mxu0 %v349
        %352 = vmatpush1.bf16.msra.mxu0 %v346
        %353 = vmatprep.subr.bf16.mxu0 0
        %354 = vmatpush1.bf16.msra.mxu0 0
        %355 = vmatprep.subr.bf16.mxu0 0
        %356 = vmatpush1.bf16.msra.mxu0 0
        %357 = vmatprep.subr.bf16.mxu0 0
        %358 = vmatpush1.bf16.msra.mxu0 0
        %359 = vmatprep.subr.bf16.mxu0 0
        %360 = vmatpush1.bf16.msra.mxu0 0
        %361 = vmatprep.subr.bf16.mxu0 0
        %362 = vmatpush1.bf16.msra.mxu0 0
        %363 = vmatprep.subr.bf16.mxu0 0
        %364 = vmatpush1.bf16.msra.mxu0 0
        %365 = vmatprep.subr.bf16.mxu0 0
        %366 = vmatpush1.bf16.msra.mxu0 0
        %367 = vmatprep.subr.bf16.mxu0 0
        %368 = vmatpush1.bf16.msra.mxu0 0
        %369 = vmatprep.subr.bf16.mxu0 0
        %370 = vmatpush1.bf16.msra.mxu0 0
        %371 = vmatprep.subr.bf16.mxu0 0
        %372 = vmatpush1.bf16.msra.mxu0 0
        %373 = vmatprep.subr.bf16.mxu0 0
        %374 = vmatpush1.bf16.msra.mxu0 0
        %375 = vmatprep.subr.bf16.mxu0 0
        %376 = vmatpush1.bf16.msra.mxu0 0
        %377 = vmatprep.subr.bf16.mxu0 0
        %378 = vmatpush1.bf16.msra.mxu0 0
        %379 = vmatprep.subr.bf16.mxu0 0
        %380 = vmatpush1.bf16.msra.mxu0 0
        %381 = vmatprep.subr.bf16.mxu0 0
        %382 = vmatpush1.bf16.msra.mxu0 0
        %383 = vmatprep.mubr.bf16.mxu0 0
        %384 = vmatmul.mubr.bf16.gmra.mrb[0].mxu0 %v339
        %v385 = vpop.f32.mrb[0].mxu0
        %v386 = vadd.f32 0.0, %v385
        %v387 = vpop.f32.mrb[0].mxu0
        %v388 = vadd.f32 0.0, %v387
        %v389 = vpop.f32.mrb[0].mxu0
        %v390 = vadd.f32 0.0, %v389
        %v391 = vpop.f32.mrb[0].mxu0
        %v392 = vadd.f32 0.0, %v391
        %393 = vmatprep.mubr.bf16.mxu0 0
        %394 = vmatmul.mubr.bf16.gmra.mrb[0].mxu0 %v342
        %v395 = vpop.f32.mrb[0].mxu0
        %v396 = vadd.f32 0.0, %v395
        %v397 = vpop.f32.mrb[0].mxu0
        %v398 = vadd.f32 0.0, %v397
        %v399 = vpop.f32.mrb[0].mxu0
        %v400 = vadd.f32 0.0, %v399
        %v401 = vpop.f32.mrb[0].mxu0
        %v402 = vadd.f32 0.0, %v401
        %403 = vdwg.mxu0
        %v404 = vadd.f32 %v305, %v386
        %v405 = vadd.f32 %v306, %v388
        %v406 = vadd.f32 %v307, %v390
        %v407 = vadd.f32 %v308, %v392
        %v408 = vadd.f32 %v309, %v396
        %v409 = vadd.f32 %v310, %v398
        %v410 = vadd.f32 %v311, %v400
        %v411 = vadd.f32 %v312, %v402
        %412 = vst [vmem:[#allocation2] sm:$0xff] %v404
        %413 = vst [vmem:[#allocation2 + $0x8] sm:$0xff] %v405
        %414 = vst [vmem:[#allocation2 + $0x10] sm:$0xff] %v406
        %415 = vst [vmem:[#allocation2 + $0x18] sm:$0xff] %v407
        %416 = vst [vmem:[#allocation2 + $0x20] sm:$0xff] %v408
        %417 = vst [vmem:[#allocation2 + $0x28] sm:$0xff] %v409
        %418 = vst [vmem:[#allocation2 + $0x30] sm:$0xff] %v410
        %419 = vst [vmem:[#allocation2 + $0x38] sm:$0xff] %v411
        // Predicated region
        $region45: #{tpu_custom_call.1} parent=39 // pred_check
          %p420 = pneg %p293
        $region46: #{tpu_custom_call.1} parent=39 // pred_check_branch
          %422 = sbr.rel (%p420) target = $region48
        $region47: #{tpu_custom_call.1} parent=39 // pred_region
          %v423 = vld [vmem:[#allocation2] sm:$0xff]
          %v424 = vld [vmem:[#allocation2 + $0x8] sm:$0xff]
          %v425 = vld [vmem:[#allocation2 + $0x10] sm:$0xff]
          %v426 = vld [vmem:[#allocation2 + $0x18] sm:$0xff]
          %v427 = vld [vmem:[#allocation2 + $0x20] sm:$0xff]
          %v428 = vld [vmem:[#allocation2 + $0x28] sm:$0xff]
          %v429 = vld [vmem:[#allocation2 + $0x30] sm:$0xff]
          %v430 = vld [vmem:[#allocation2 + $0x38] sm:$0xff]
          %v431 = vld [vmem:[%s2] sm:$0xff]
          %v432 = vld [vmem:[%s2 + $0x8] sm:$0xff]
          %v433 = vld [vmem:[%s2 + $0x10] sm:$0xff]
          %v434 = vld [vmem:[%s2 + $0x18] sm:$0xff]
          %436 = vset.pattern.permute.xlu0 0
          %437 = vperm.xlu0 %436, %v431
          %v438 = vpop.permute.xlu0 %437
          %441 = vset.pattern.permute.xlu0 0
          %442 = vperm.xlu0 %441, %v432
          %v443 = vpop.permute.xlu0 %442
          %446 = vset.pattern.permute.xlu0 0
          %447 = vperm.xlu0 %446, %v433
          %v448 = vpop.permute.xlu0 %447
          %451 = vset.pattern.permute.xlu0 0
          %452 = vperm.xlu0 %451, %v434
          %v453 = vpop.permute.xlu0 %452
          %v455 = vadd.f32 %v423, %v438
          %v456 = vadd.f32 %v424, %v438
          %v457 = vadd.f32 %v425, %v443
          %v458 = vadd.f32 %v426, %v443
          %v459 = vadd.f32 %v427, %v448
          %v460 = vadd.f32 %v428, %v448
          %v461 = vadd.f32 %v429, %v453
          %v462 = vadd.f32 %v430, %v453
          %v463 = vmax.f32 %v455, 0.0
          %v464 = vmax.f32 %v456, 0.0
          %v465 = vmax.f32 %v457, 0.0
          %v466 = vmax.f32 %v458, 0.0
          %v467 = vmax.f32 %v459, 0.0
          %v468 = vmax.f32 %v460, 0.0
          %v469 = vmax.f32 %v461, 0.0
          %v470 = vmax.f32 %v462, 0.0
          %v471 = vpack.c.bf16 %v465, %v463
          %v472 = vpack.c.bf16 %v466, %v464
          %v473 = vpack.c.bf16 %v469, %v467
          %v474 = vpack.c.bf16 %v470, %v468
          %v475 = vld [vmem:[%s3] sm:$0xf]
          %v476 = vld [vmem:[%s3 + $0x4] sm:$0xf]
          %v477 = vld [vmem:[%s4] sm:$0xff]
          %v478 = vld [vmem:[%s4 + $0x8] sm:$0xff]
          %480 = vset.pattern.permute.xlu0 0
          %481 = vperm.xlu0 %480, %v477
          %v482 = vpop.permute.xlu0 %481
          %485 = vset.pattern.permute.xlu0 0
          %486 = vperm.xlu0 %485, %v478
          %v487 = vpop.permute.xlu0 %486
          %v491 = vunpack.c.l.b16 %v475
          %v492 = vunpack.c.l.b16 %v476
          %v493 = vpack.c.b16 %v492, %v491
          %vm494 = vcmask 261120
          %v496 = vsel %vm494, %v493, 0
          %498 = vmatprep.subr.bf16.mxu0 %v472
          %499 = vmatpush1.bf16.msra.mxu0 %v471
          %500 = vmatprep.subr.bf16.mxu0 %v474
          %501 = vmatpush1.bf16.msra.mxu0 %v473
          %502 = vmatprep.subr.bf16.mxu0 0
          %503 = vmatpush1.bf16.msra.mxu0 0
          %504 = vmatprep.subr.bf16.mxu0 0
          %505 = vmatpush1.bf16.msra.mxu0 0
          %506 = vmatprep.subr.bf16.mxu0 0
          %507 = vmatpush1.bf16.msra.mxu0 0
          %508 = vmatprep.subr.bf16.mxu0 0
          %509 = vmatpush1.bf16.msra.mxu0 0
          %510 = vmatprep.subr.bf16.mxu0 0
          %511 = vmatpush1.bf16.msra.mxu0 0
          %512 = vmatprep.subr.bf16.mxu0 0
          %513 = vmatpush1.bf16.msra.mxu0 0
          %514 = vmatprep.subr.bf16.mxu0 0
          %515 = vmatpush1.bf16.msra.mxu0 0
          %516 = vmatprep.subr.bf16.mxu0 0
          %517 = vmatpush1.bf16.msra.mxu0 0
          %518 = vmatprep.subr.bf16.mxu0 0
          %519 = vmatpush1.bf16.msra.mxu0 0
          %520 = vmatprep.subr.bf16.mxu0 0
          %521 = vmatpush1.bf16.msra.mxu0 0
          %522 = vmatprep.subr.bf16.mxu0 0
          %523 = vmatpush1.bf16.msra.mxu0 0
          %524 = vmatprep.subr.bf16.mxu0 0
          %525 = vmatpush1.bf16.msra.mxu0 0
          %526 = vmatprep.subr.bf16.mxu0 0
          %527 = vmatpush1.bf16.msra.mxu0 0
          %528 = vmatprep.subr.bf16.mxu0 0
          %529 = vmatpush1.bf16.msra.mxu0 0
          %530 = vmatprep.mubr.bf16.mxu0 0
          %531 = vmatmul.mubr.bf16.gmra.mrb[0].mxu0 %v496
          %v532 = vpop.f32.mrb[0].mxu0
          %v533 = vadd.f32 %v482, %v532
          %v534 = vpop.f32.mrb[0].mxu0
          %v535 = vadd.f32 %v482, %v534
          %v536 = vpop.f32.mrb[0].mxu0
          %v537 = vadd.f32 %v487, %v536
          %v538 = vpop.f32.mrb[0].mxu0
          %v539 = vadd.f32 %v487, %v538
          %540 = vdwg.mxu0
          %v541 = vpack.c.bf16 %v537, %v533
          %v542 = vpack.c.bf16 %v539, %v535
          %v545 = vunpack.c.l.b16 %v541
          %v546 = vunpack.c.l.b16 %v542
          %v547 = vunpack.c.h.b16 %v541
          %v548 = vunpack.c.h.b16 %v542
          %v549 = vpack.c.b16 %v546, %v545
          %v550 = vpack.c.b16 %v548, %v547
          %553 = vst [vmem:[%s272] sm:$0xff] %v549
          %554 = vst [vmem:[%s272 + $0x8] sm:$0xff] %v550
        $region48: #{tpu_custom_call.1} parent=39 // pred_fallthru
          _
        %s555 = sand.u32 %s167, 1
        %s556 = scalar_lea.sflag [#allocation4], %s555
        %s557 = sand.u32 %s167, 1
        %s558 = smul.addr %s557, 16
        %s559 = scalar_lea.vmem [#allocation3], %s558
        // Predicated region
        $region49: #{tpu_custom_call.1} parent=39 // pred_check
          %p560 = pneg %p177
        $region50: #{tpu_custom_call.1} parent=39 // pred_check_branch
          %562 = sbr.rel (%p560) target = $region52
        $region51: #{tpu_custom_call.1} parent=39 // pred_region
          %s563 = smul.u32 2, %s25
          %s565 = ssub.s32 256, 256
          %566 = vsyncadd %s556, %s565
          %s567 = smul.addr %s24, 4
          %s568 = sadd.s32 %s563, %s567
          %s569 = smul.addr %s568, 64
          %s570 = scalar_lea.hbm %s5, %s569
          %s571 = sshll.u32 %s559, 4
          %s572 = int_to_ptr.vmem [resolvable:$true] %s571
          %577 = dma.vmem_to_hbm [thread:$0]  %s572, 256, %s570, %s556, 128, 128, 8
        $region52: #{tpu_custom_call.1} parent=39 // pred_fallthru
          _
      $region40: #{tpu_custom_call.1} parent=5 // pred_fallthru
        _
      %p578 = scmp.le.s32.totalorder 2, %s14
      // Predicated region
      $region53: #{tpu_custom_call.1} parent=5 // pred_check
        %p579 = pneg %p578
      $region54: #{tpu_custom_call.1} parent=5 // pred_check_branch
        %581 = sbr.rel (%p579) target = $region56
      $region55: #{tpu_custom_call.1} parent=5 // pred_region
        %s582 = ssub.s32 %s14, 2
        // Predicated region
        $region57: #{tpu_custom_call.1} parent=55 // pred_check
          %p583 = pneg %p183
        $region58: #{tpu_custom_call.1} parent=55 // pred_check_branch
          %585 = sbr.rel (%p583) target = $region60
        $region59: #{tpu_custom_call.1} parent=55 // pred_region
          %s586 = sand.u32 %s168, 1
          %s587 = scalar_lea.sflag [#allocation4], %s586
          %s588 = sand.u32 %s168, 1
          %s589 = smul.addr %s588, 16
          %s590 = scalar_lea.vmem [#allocation3], %s589
          %591 = dma.done %s587, 256
        $region60: #{tpu_custom_call.1} parent=55 // pred_fallthru
          _
      $region56: #{tpu_custom_call.1} parent=5 // pred_fallthru
        _
    $region6: #{tpu_custom_call.1} parent=1 // loop_footer
      %s18 = sadd.s32 1, %s14
    $region7: #{tpu_custom_call.1} parent=1 // loop_footer_branch
      %13 = sbr.rel target = $region3
    $region8: #{tpu_custom_call.1} parent=1 // loop_exit
      _
    %592 = vsyncpa [#allocation4], 1
    %s593 = scalar_lea.sflag [#allocation4], 1
    %594 = vsyncpa %s593, 1

</llo_original>
